<compile_context>
chip_gen: v5e
topology: v5e:2x2
jax: 0.10.0
libtpu: 0.0.40
codegen_flags: <defaults>
</compile_context>

<pallas_src>
import functools

import jax
import jax.numpy as jnp
from jax import lax
from jax.experimental import pallas as pl
from jax.experimental.pallas import tpu as pltpu

_INV_SQRT2 = 0.7071067811865476
_SQRT_2_OVER_PI = 0.7978845608028654
_TANH_COEFF = 0.044715
_LANE = 128


# --------------------------------------------------------------------------
# Kernels
# --------------------------------------------------------------------------
def _gelu_exact_kernel(x_ref, o_ref):
    # Exact GELU: 0.5 * x * (1 + erf(x / sqrt(2))).  Compute in f32 and cast
    # back; lax.erf lowers to a VALU polynomial (exact-erf semantics).
    x = x_ref[...].astype(jnp.float32)
    o_ref[...] = (0.5 * x * (1.0 + lax.erf(x * _INV_SQRT2))).astype(o_ref.dtype)


def _gelu_tanh_kernel(x_ref, o_ref):
    # tanh-approximate GELU (PyTorch approximate='tanh').  The tanh runs on
    # the EUP slot (otherwise idle here), leaving only ~5 cheap VALU ops per
    # element -- use when the erf polynomial is the saturating slot
    # (v7x f32, bf16 inputs).  Numerics differ from exact erf by ~1e-3.
    x = x_ref[...].astype(jnp.float32)
    inner = _SQRT_2_OVER_PI * (x + _TANH_COEFF * x * x * x)
    o_ref[...] = (0.5 * x * (1.0 + jnp.tanh(inner))).astype(o_ref.dtype)


# --------------------------------------------------------------------------
# Host-side helpers (all run at trace time / Python level)
# --------------------------------------------------------------------------
def _chip_generation():
    """Best-effort TPU generation detection ('v5e' / 'v6e' / 'v7x' / 'unknown')."""
    try:
        kind = jax.devices()[0].device_kind.lower()
    except Exception:  # pragma: no cover - no devices / odd backend
        return "unknown"
    if "v7" in kind or "7x" in kind:
        return "v7x"
    if "v6" in kind:
        return "v6e"
    if "v5" in kind:
        return "v5e"
    return "unknown"


def _target_block_bytes(gen):
    # v7x: 3.2 TB/s HBM -> 2 MiB blocks leave the fixed per-step overhead at
    # ~20-25% of step time; 4 MiB cuts that to <10% and still fits (with f32
    # temporaries + double-buffering) under an explicit VMEM limit well below
    # v7x's 64 MiB physical capacity.
    # v6e: 4 MiB is on the measured roofline plateau; ample 128 MiB VMEM.
    # v5e / unknown: keep 2 MiB (bandwidth-bound anyway; small scoped VMEM).
    if gen in ("v7x", "v6e"):
        return 4 * 1024 * 1024
    return 2 * 1024 * 1024


def _pick_cols(n):
    """Widest lane-dense column count (multiple of 128) that divides n."""
    for c in (4096, 2048, 1024, 512, 256, 128):
        if n % c == 0:
            return c
    return None


def _sublane_for(dtype):
    """Native sublane multiple: 8 for 32-bit, 16 for 16-bit, 32 for 8-bit."""
    return max(8, 32 // jnp.dtype(dtype).itemsize)


# --------------------------------------------------------------------------
# Public wrapper
# --------------------------------------------------------------------------
@functools.partial(jax.jit, static_argnames=("approximate",))
def gelu_pallas(x, approximate=False):
    """GELU via a Pallas TPU kernel.

    approximate=False (default): exact erf GELU (matches the PyTorch module).
    approximate=True: tanh-form GELU (PyTorch approximate='tanh'); EUP-routed
    transcendental for compute-bound cases, ~1e-3 numeric deviation.
    """
    orig_shape = x.shape
    dtype = x.dtype
    flat = x.reshape(-1)
    n = flat.shape[0]
    if n == 0:
        return x

    gen = _chip_generation()
    target_block_bytes = _target_block_bytes(gen)

    # Common case: element count divisible by 128 -> no padding copy at all.
    cols = _pick_cols(n)
    n_pad = 0
    if cols is None:
        # Rare ragged case: pad at most 127 elements.  GELU runs over the pad
        # (GELU(0) == 0) and the tail is sliced off below; nothing reduces
        # over the padded region.
        # TODO(synk): if ragged counts show up in production, handle the
        # <=127-element tail with an in-kernel masked lane store instead of
        # this extra pad+slice pass over the tensor.
        n_pad = (-n) % _LANE
        flat = jnp.pad(flat, (0, n_pad))
        cols = _pick_cols(n + n_pad)

    rows = flat.shape[0] // cols
    x2d = flat.reshape(rows, cols)

    elem_bytes = jnp.dtype(dtype).itemsize
    sublane = _sublane_for(dtype)
    tr_target = max(
        sublane,
        (target_block_bytes // (cols * elem_bytes)) // sublane * sublane,
    )

    if rows <= tr_target:
        if gen == "v7x" and rows >= 2 * sublane:
            # Force >= 2 grid steps so dimension_semantics=("parallel",)
            # shards across v7x's two TensorCores even for one-block inputs.
            half = (rows + 1) // 2
            tr = ((half + sublane - 1) // sublane) * sublane
        else:
            tr = rows          # full extent: always a legal block dim
    else:
        tr = tr_target         # multiple of the native sublane tiling

    grid = (pl.cdiv(rows, tr),)  # ragged final block handled (masked) by Pallas

    # Explicit VMEM budget: in + out double-buffered, plus ~3 block-sized f32
    # temporaries for the erf/tanh chain, plus 25% headroom.  Capped at
    # 48 MiB so it stays under v7x's 64 MiB physical VMEM per TensorCore.
    block_bytes = tr * cols * elem_bytes
    vmem_needed = 4 * block_bytes + 3 * tr * cols * 4
    vmem_limit = int(min(48 * 1024 * 1024,
                         max(vmem_needed * 5 // 4, 16 * 1024 * 1024)))

    kernel = _gelu_tanh_kernel if approximate else _gelu_exact_kernel

    out2d = pl.pallas_call(
        kernel,
        out_shape=jax.ShapeDtypeStruct((rows, cols), dtype),
        grid_spec=pltpu.PrefetchScalarGridSpec(
            num_scalar_prefetch=0,
            grid=grid,
            in_specs=[pl.BlockSpec((tr, cols), lambda i: (i, 0))],
            out_specs=pl.BlockSpec((tr, cols), lambda i: (i, 0)),
        ),
        compiler_params=pltpu.CompilerParams(
            dimension_semantics=("parallel",),
            vmem_limit_bytes=vmem_limit,
        ),
        cost_estimate=pl.CostEstimate(
            flops=10 * n,
            transcendentals=n,
            bytes_accessed=2 * n * elem_bytes),
    )(x2d)

    out = out2d.reshape(-1)
    if n_pad:
        out = out[:n]
    return out.reshape(orig_shape)


def _gelu_ref(x):
    x32 = x.astype(jnp.float32)
    return (x32 * 0.5 * (1.0 + lax.erf(x32 * _INV_SQRT2))).astype(x.dtype)


if __name__ == "__main__":
    key = jax.random.PRNGKey(0)

    # Shape implied by the module's forward (NCHW elementwise).
    x = jax.random.normal(key, (2, 4, 16, 16), dtype=jnp.float32)
    y = gelu_pallas(x)
    jax.block_until_ready(y)
    assert y.shape == x.shape and y.dtype == x.dtype
    assert jnp.allclose(y, _gelu_ref(x), atol=1e-5, rtol=1e-5)

    # Exercise the ragged-grid path (rows not a multiple of the row tile).
    x2 = jax.random.normal(jax.random.PRNGKey(1), (520, 1024), dtype=jnp.float32)
    y2 = gelu_pallas(x2)
    jax.block_until_ready(y2)
    assert jnp.allclose(y2, _gelu_ref(x2), atol=1e-5, rtol=1e-5)

    # Exercise the rare non-multiple-of-128 padding path.
    x3 = jax.random.normal(jax.random.PRNGKey(2), (3, 5, 7, 9), dtype=jnp.float32)
    y3 = gelu_pallas(x3)
    jax.block_until_ready(y3)
    assert y3.shape == x3.shape
    assert jnp.allclose(y3, _gelu_ref(x3), atol=1e-5, rtol=1e-5)

    # Opt-in EUP-routed tanh approximation (different numerics, looser check).
    y4 = gelu_pallas(x, approximate=True)
    jax.block_until_ready(y4)
    assert jnp.allclose(y4, _gelu_ref(x), atol=3e-3, rtol=3e-3)

    print("KERNEL_OK")
</pallas_src>

<mosaic_0001>
module attributes {stable_mosaic.version = 11 : i64} {
  func.func @_gelu_exact_kernel(%arg0: i32, %arg1: memref<1x2048xf32, #tpu.memory_space<vmem>>, %arg2: memref<1x2048xf32, #tpu.memory_space<vmem>>) attributes {dimension_semantics = [#tpu.dimension_semantics<parallel>], iteration_bounds = array<i64: 1>, scalar_prefetch = 0 : i64, scratch_operands = 0 : i64, tpu.core_type = #tpu.core_type<tc>, window_params = [{transform_indices = @transform_0, window_bounds = array<i64: 1, 2048>}, {transform_indices = @transform_1, window_bounds = array<i64: 1, 2048>}]} {
    %c0 = arith.constant 0 : index
    %c0_0 = arith.constant 0 : index
    %0 = vector.load %arg1[%c0, %c0_0] : memref<1x2048xf32, #tpu.memory_space<vmem>>, vector<1x2048xf32>
    %cst = arith.constant 5.000000e-01 : f32
    %1 = vector.broadcast %cst : f32 to vector<1x2048xf32>
    %2 = arith.mulf %1, %0 : vector<1x2048xf32>
    %cst_1 = arith.constant 0.707106769 : f32
    %3 = vector.broadcast %cst_1 : f32 to vector<1x2048xf32>
    %4 = arith.mulf %0, %3 : vector<1x2048xf32>
    %5 = math.erf %4 : vector<1x2048xf32>
    %cst_2 = arith.constant 1.000000e+00 : f32
    %6 = vector.broadcast %cst_2 : f32 to vector<1x2048xf32>
    %7 = arith.addf %6, %5 : vector<1x2048xf32>
    %8 = arith.mulf %2, %7 : vector<1x2048xf32>
    %c0_3 = arith.constant 0 : index
    %c0_4 = arith.constant 0 : index
    %9 = vector.load %arg2[%c0_3, %c0_4] : memref<1x2048xf32, #tpu.memory_space<vmem>>, vector<1x2048xf32>
    tpu.vector_store %arg2[%c0_3, %c0_4], %8 {strides = array<i32>} : memref<1x2048xf32, #tpu.memory_space<vmem>>, vector<1x2048xf32>,
    return
  }
  func.func @transform_0(%arg0: i32) -> (i32, i32) {
    %c0_i32 = arith.constant 0 : i32
    %c0_i32_0 = arith.constant 0 : i32
    return %arg0, %c0_i32 : i32, i32
  }
  func.func @transform_1(%arg0: i32) -> (i32, i32) {
    %c0_i32 = arith.constant 0 : i32
    %c0_i32_0 = arith.constant 0 : i32
    return %arg0, %c0_i32 : i32, i32
  }
}

</mosaic_0001>

<llo_original>
// kernel: gelu_pallas.1
$region0: #{gelu_pallas.1}
  #allocation0 [shape = 'u32[]', space=smem, size = 0x4, offset = 0x4, fixed_abs, tag = 'smem constant byte address 0x4 - core index']
  #allocation1 [shape = 'u32[72,128]{1,0:T(1,128)}', space=vmem, size = 0x9000, scoped, tag = 'internal scratch']
  %s0 = inlined_call_operand.vmem [shape: f32[1,2048], index: 0, kind: input, shape index: {}]
  %s1 = inlined_call_operand.vmem [shape: f32[1,2048], index: 1, kind: output, shape index: {}]
  %s2 = sld [smem:[#allocation0]]
  $region14: #{gelu_pallas.1} parent=0
    _
  %s4 = ssub.s32 1, %s2
  %s5 = scalar_select 0, %s4, %s2
  // Predicated region
  $region2: #{gelu_pallas.1} parent=0 // pred_check
    _
  $region3: #{gelu_pallas.1} parent=0 // pred_check_branch
    %7 = sbr.rel (0) target = $region5
  $region4: #{gelu_pallas.1} parent=0 // pred_region
    _
  $region5: #{gelu_pallas.1} parent=0 // pred_fallthru
    _
  %v8 = vld [vmem:[%s0] sm:$0xff]
  %v9 = vld [vmem:[%s0 + $0x8] sm:$0xff]
  %v10 = vmul.f32 %v8, 0.5
  %v11 = vmul.f32 %v9, 0.5
  %v12 = vmul.f32 %v8, 0.70710677
  %v13 = vmul.f32 %v9, 0.70710677
  %v14 = vmul.f32 %v12, %v12
  %v15 = vmin.f32 16.0, %v14
  %v16 = vmul.f32 %v15, 2.1237322e-06
  %v17 = vadd.f32 %v16, 0.00028619796
  %v18 = vmul.f32 %v15, %v17
  %v19 = vadd.f32 %v18, 0.0036580483
  %v20 = vmul.f32 %v15, %v19
  %v21 = vadd.f32 %v20, 0.05243302
  %v22 = vmul.f32 %v15, %v21
  %v23 = vadd.f32 %v22, 0.18741608
  %v24 = vmul.f32 %v15, %v23
  %v25 = vadd.f32 %v24, 1.1283791
  %v26 = vmul.f32 %v12, %v25
  %v27 = vmul.f32 %v15, 3.8918573e-05
  %v28 = vadd.f32 %v27, 0.001143296
  %v29 = vmul.f32 %v15, %v28
  %v30 = vadd.f32 %v29, 0.014752088
  %v31 = vmul.f32 %v15, %v30
  %v32 = vadd.f32 %v31, 0.112945676
  %v33 = vmul.f32 %v15, %v32
  %v34 = vadd.f32 %v33, 0.4994258
  %v35 = vmul.f32 %v15, %v34
  %v36 = vadd.f32 %v35, 1.0
  %v37 = vrcp.pop %v36
  %v38 = vmul.f32 %v36, %v37
  %v39 = vsub.f32 1.0, %v38
  %v40 = vmul.f32 %v37, %v39
  %v41 = vadd.f32 %v37, %v40
  %vm42 = vweird.f32 %v36
  %vm43 = vweird.f32 %v37
  %vm44 = vmor %vm42, %vm43
  %v45 = vsel %vm44, %v37, %v41
  %v46 = vand.u32 2147483647, %v36
  %vm47 = vcmp.eq.f32.partialorder %v46, 8.507059e+37
  %v48 = vand.u32 %v36, 2147483648
  %v49 = vor.u32 1.1754944e-38, %v48
  %v50 = vsel %vm47, %v49, %v45
  %v51 = vmul.f32 %v26, %v50
  %v52 = vmin.f32 %v51, 1.0
  %v53 = vmax.f32 %v52, -1.0
  %v54 = vmul.f32 %v13, %v13
  %v55 = vmin.f32 16.0, %v54
  %v56 = vmul.f32 %v55, 2.1237322e-06
  %v57 = vadd.f32 %v56, 0.00028619796
  %v58 = vmul.f32 %v55, %v57
  %v59 = vadd.f32 %v58, 0.0036580483
  %v60 = vmul.f32 %v55, %v59
  %v61 = vadd.f32 %v60, 0.05243302
  %v62 = vmul.f32 %v55, %v61
  %v63 = vadd.f32 %v62, 0.18741608
  %v64 = vmul.f32 %v55, %v63
  %v65 = vadd.f32 %v64, 1.1283791
  %v66 = vmul.f32 %v13, %v65
  %v67 = vmul.f32 %v55, 3.8918573e-05
  %v68 = vadd.f32 %v67, 0.001143296
  %v69 = vmul.f32 %v55, %v68
  %v70 = vadd.f32 %v69, 0.014752088
  %v71 = vmul.f32 %v55, %v70
  %v72 = vadd.f32 %v71, 0.112945676
  %v73 = vmul.f32 %v55, %v72
  %v74 = vadd.f32 %v73, 0.4994258
  %v75 = vmul.f32 %v55, %v74
  %v76 = vadd.f32 %v75, 1.0
  %v77 = vrcp.pop %v76
  %v78 = vmul.f32 %v76, %v77
  %v79 = vsub.f32 1.0, %v78
  %v80 = vmul.f32 %v77, %v79
  %v81 = vadd.f32 %v77, %v80
  %vm82 = vweird.f32 %v76
  %vm83 = vweird.f32 %v77
  %vm84 = vmor %vm82, %vm83
  %v85 = vsel %vm84, %v77, %v81
  %v86 = vand.u32 2147483647, %v76
  %vm87 = vcmp.eq.f32.partialorder %v86, 8.507059e+37
  %v88 = vand.u32 %v76, 2147483648
  %v89 = vor.u32 1.1754944e-38, %v88
  %v90 = vsel %vm87, %v89, %v85
  %v91 = vmul.f32 %v66, %v90
  %v92 = vmin.f32 %v91, 1.0
  %v93 = vmax.f32 %v92, -1.0
  %v94 = vadd.f32 %v53, 1.0
  %v95 = vadd.f32 %v93, 1.0
  %v96 = vmul.f32 %v10, %v94
  %v97 = vmul.f32 %v11, %v95
  %98 = vst [vmem:[%s1] sm:$0xff] %v96
  %99 = vst [vmem:[%s1 + $0x8] sm:$0xff] %v97
  // Predicated region
  $region6: #{gelu_pallas.1} parent=0 // pred_check
    _
  $region7: #{gelu_pallas.1} parent=0 // pred_check_branch
    %101 = sbr.rel (0) target = $region9
  $region8: #{gelu_pallas.1} parent=0 // pred_region
    _
  $region9: #{gelu_pallas.1} parent=0 // pred_fallthru
    _
  // Predicated region
  $region10: #{gelu_pallas.1} parent=0 // pred_check
    _
  $region11: #{gelu_pallas.1} parent=0 // pred_check_branch
    %103 = sbr.rel (0) target = $region13
  $region12: #{gelu_pallas.1} parent=0 // pred_region
    _
  $region13: #{gelu_pallas.1} parent=0 // pred_fallthru
    _

</llo_original>
